<compile_context>
chip_gen: v7x
topology: tpu7x:2x2x1
jax: 0.10.0
libtpu: 0.0.40
codegen_flags: <defaults>
</compile_context>

<pallas_src>
import jax
import jax.numpy as jnp
from jax import lax
from jax.experimental import pallas as pl
from jax.experimental.pallas import tpu as pltpu

# ---- shapes implied by the module --------------------------------------
B, CIN, H, W = 2, 3, 16, 16          # input NCHW
COUT, KH, KW = 64, 3, 3              # conv: 3 -> 64, 3x3, pad 1
HO, WO = H // 2, W // 2              # after 2x2 max-pool
HW = HO * WO                         # 64 pooled pixels
KDIM = KH * KW * CIN                 # im2col contraction dim = 27
FLAT = COUT * HW                     # 64 * 8 * 8 = 4096 (Linear in-features)
M = B * 4 * HW                       # 512 stacked matmul rows (batch x quadrant x hw)


# ---- Pallas kernel: one stacked conv-matmul + maxpool + bias/ReLU + head ----
def net_kernel(p_ref, wc_ref, bc_ref, wl_ref, bl_ref, o_ref):
    # p_ref : VMEM (M, KDIM)    im2col patches, rows ordered (b, quadrant, hw)
    # wc_ref: VMEM (KDIM, COUT) conv weight as matrix [(ci,kh,kw), co]
    # bc_ref: VMEM (1, COUT)    conv bias
    # wl_ref: VMEM (HW, COUT)   linear weight re-laid to (hw, c)
    # bl_ref: VMEM (1, 1)       linear bias
    # o_ref : VMEM (B, 1)       output
    z = jnp.dot(p_ref[...], wc_ref[...],
                preferred_element_type=jnp.float32)            # (512, 64)
    pooled = jnp.max(z.reshape(B, 4, HW, COUT), axis=1)        # MaxPool2d(2) -> (B, HW, C)
    act = jnp.maximum(pooled + bc_ref[...][None], 0.0)         # bias + ReLU (post-pool, exact)
    weighted = act * wl_ref[...][None]                         # (B, HW, C)
    partial = jnp.sum(weighted, axis=1)                        # (B, C)  sublane reduce
    o_ref[...] = jnp.sum(partial, axis=1, keepdims=True) + bl_ref[...]   # (B, 1)


def net_forward(x, w_conv, b_conv, w_lin, b_lin):
    """x: (B, CIN, H, W) NCHW float32 -> (B, 1) float32."""
    # ---- host glue: single fused im2col + layout plumbing (no compute) ----
    patches = lax.conv_general_dilated_patches(
        x, (KH, KW), (1, 1), ((1, 1), (1, 1)),
        dimension_numbers=("NCHW", "OIHW", "NCHW"))            # (B, 27, 16, 16), K=(ci,kh,kw)
    # rows ordered (b, dh, dw, ho, wo): quadrant-major so the 2x2 max-pool is a
    # max over the 4 contiguous row-slabs of the single stacked matmul output
    lhs = (patches.reshape(B, KDIM, HO, 2, WO, 2)
                  .transpose(0, 3, 5, 2, 4, 1)
                  .reshape(M, KDIM))                           # (512, 27)

    w_mat = w_conv.reshape(COUT, KDIM).T                       # (27, 64) [(ci,kh,kw), co]
    b_c = b_conv.reshape(1, COUT)
    # PyTorch flattens (B, C, HO, WO) as c*64 + ho*8 + wo; re-lay into (hw, c)
    w_l = w_lin.reshape(COUT, HO, WO).transpose(1, 2, 0).reshape(HW, COUT)
    b_l = b_lin.reshape(1, 1)

    return pl.pallas_call(
        net_kernel,
        out_shape=jax.ShapeDtypeStruct((B, 1), jnp.float32),
        grid_spec=pltpu.PrefetchScalarGridSpec(
            num_scalar_prefetch=0,
            grid=(1,),
            in_specs=[
                pl.BlockSpec((M, KDIM), lambda i: (0, 0)),
                pl.BlockSpec((KDIM, COUT), lambda i: (0, 0)),
                pl.BlockSpec((1, COUT), lambda i: (0, 0)),
                pl.BlockSpec((HW, COUT), lambda i: (0, 0)),
                pl.BlockSpec((1, 1), lambda i: (0, 0)),
            ],
            out_specs=pl.BlockSpec((B, 1), lambda i: (0, 0)),
        ),
        compiler_params=pltpu.CompilerParams(
            dimension_semantics=("arbitrary",),
        ),
    )(lhs, w_mat, b_c, w_l, b_l)


# ---- pure-JAX reference (independent path, HIGHEST precision) -----------
def net_reference(x, w_conv, b_conv, w_lin, b_lin):
    y = lax.conv_general_dilated(
        x, w_conv, window_strides=(1, 1), padding=((1, 1), (1, 1)),
        dimension_numbers=("NCHW", "OIHW", "NCHW"),
        precision=lax.Precision.HIGHEST,
    )
    y = jnp.maximum(y + b_conv[None, :, None, None], 0.0)
    y = lax.reduce_window(y, -jnp.inf, lax.max, (1, 1, 2, 2), (1, 1, 2, 2), "VALID")
    flat = y.reshape(B, -1)                       # (B, 4096), NCHW flatten order
    return flat @ w_lin.T + b_lin[None, :]        # (B, 1)


if __name__ == "__main__":
    key = jax.random.PRNGKey(0)
    k_x, k_wc, k_bc, k_wl, k_bl = jax.random.split(key, 5)

    x = jax.random.normal(k_x, (B, CIN, H, W), dtype=jnp.float32)
    w_conv = jax.random.normal(k_wc, (COUT, CIN, KH, KW), dtype=jnp.float32) * 0.05
    b_conv = jax.random.normal(k_bc, (COUT,), dtype=jnp.float32) * 0.05
    w_lin = jax.random.normal(k_wl, (1, FLAT), dtype=jnp.float32) * 0.02
    b_lin = jax.random.normal(k_bl, (1,), dtype=jnp.float32) * 0.02

    out = jax.jit(net_forward)(x, w_conv, b_conv, w_lin, b_lin)
    out = jax.block_until_ready(out)

    ref = net_reference(x, w_conv, b_conv, w_lin, b_lin)
    assert out.shape == (B, 1), out.shape
    # Kernel matmul runs at DEFAULT (single-pass bf16) MXU precision with f32
    # accumulation per perf review; reference runs at HIGHEST -> looser tolerance.
    assert jnp.allclose(out, ref, rtol=1e-2, atol=1e-2), (out, ref)

    print("KERNEL_OK")
</pallas_src>

<mosaic_0001>
module attributes {stable_mosaic.version = 11 : i64} {
  func.func @net_kernel(%arg0: i32, %arg1: memref<512x27xf32, #tpu.memory_space<vmem>>, %arg2: memref<27x64xf32, #tpu.memory_space<vmem>>, %arg3: memref<1x64xf32, #tpu.memory_space<vmem>>, %arg4: memref<64x64xf32, #tpu.memory_space<vmem>>, %arg5: memref<1x1xf32, #tpu.memory_space<vmem>>, %arg6: memref<2x1xf32, #tpu.memory_space<vmem>>) attributes {dimension_semantics = [#tpu.dimension_semantics<arbitrary>], iteration_bounds = array<i64: 1>, scalar_prefetch = 0 : i64, scratch_operands = 0 : i64, tpu.core_type = #tpu.core_type<tc>, window_params = [{pipeline_mode = #tpu.pipeline_mode<synchronous>, transform_indices = @transform_0, window_bounds = array<i64: 512, 27>}, {pipeline_mode = #tpu.pipeline_mode<synchronous>, transform_indices = @transform_1, window_bounds = array<i64: 27, 64>}, {pipeline_mode = #tpu.pipeline_mode<synchronous>, transform_indices = @transform_2, window_bounds = array<i64: 1, 64>}, {pipeline_mode = #tpu.pipeline_mode<synchronous>, transform_indices = @transform_3, window_bounds = array<i64: 64, 64>}, {pipeline_mode = #tpu.pipeline_mode<synchronous>, transform_indices = @transform_4, window_bounds = array<i64: 1, 1>}, {pipeline_mode = #tpu.pipeline_mode<synchronous>, transform_indices = @transform_5, window_bounds = array<i64: 2, 1>}]} {
    %c0 = arith.constant 0 : index
    %c0_0 = arith.constant 0 : index
    %0 = vector.load %arg1[%c0, %c0_0] : memref<512x27xf32, #tpu.memory_space<vmem>>, vector<512x27xf32>
    %c0_1 = arith.constant 0 : index
    %c0_2 = arith.constant 0 : index
    %1 = vector.load %arg2[%c0_1, %c0_2] : memref<27x64xf32, #tpu.memory_space<vmem>>, vector<27x64xf32>
    %cst = arith.constant dense<0.000000e+00> : vector<512x64xf32>
    %2 = tpu.matmul %0, %1, %cst {dimension_numbers = #tpu.dot_dimension_numbers<[1], [0], [0], [1], [0, 0, 1, 1], [], []>} : vector<512x27xf32>, vector<27x64xf32>, vector<512x64xf32> -> vector<512x64xf32>
    %3 = vector.shape_cast %2 : vector<512x64xf32> to vector<2x4x64x64xf32>
    %cst_3 = arith.constant dense<0xFF800000> : vector<2x64x64xf32>
    %4 = vector.multi_reduction <maximumf>, %3, %cst_3 [1] : vector<2x4x64x64xf32> to vector<2x64x64xf32>
    %c0_4 = arith.constant 0 : index
    %c0_5 = arith.constant 0 : index
    %5 = vector.load %arg3[%c0_4, %c0_5] : memref<1x64xf32, #tpu.memory_space<vmem>>, vector<1x64xf32>
    %6 = vector.shape_cast %5 : vector<1x64xf32> to vector<1x1x64xf32>
    %7 = vector.broadcast %6 : vector<1x1x64xf32> to vector<2x64x64xf32>
    %8 = arith.addf %4, %7 : vector<2x64x64xf32>
    %cst_6 = arith.constant 0.000000e+00 : f32
    %9 = vector.broadcast %cst_6 : f32 to vector<2x64x64xf32>
    %10 = arith.maximumf %8, %9 : vector<2x64x64xf32>
    %c0_7 = arith.constant 0 : index
    %c0_8 = arith.constant 0 : index
    %11 = vector.load %arg4[%c0_7, %c0_8] : memref<64x64xf32, #tpu.memory_space<vmem>>, vector<64x64xf32>
    %12 = vector.shape_cast %11 : vector<64x64xf32> to vector<1x64x64xf32>
    %13 = vector.broadcast %12 : vector<1x64x64xf32> to vector<2x64x64xf32>
    %14 = arith.mulf %10, %13 : vector<2x64x64xf32>
    %cst_9 = arith.constant dense<0.000000e+00> : vector<2x64xf32>
    %15 = vector.multi_reduction <add>, %14, %cst_9 [1] : vector<2x64x64xf32> to vector<2x64xf32>
    %cst_10 = arith.constant dense<0.000000e+00> : vector<2xf32>
    %16 = vector.multi_reduction <add>, %15, %cst_10 [1] : vector<2x64xf32> to vector<2xf32>
    %17 = vector.shape_cast %16 : vector<2xf32> to vector<2x1xf32>
    %c0_11 = arith.constant 0 : index
    %c0_12 = arith.constant 0 : index
    %18 = vector.load %arg5[%c0_11, %c0_12] : memref<1x1xf32, #tpu.memory_space<vmem>>, vector<1x1xf32>
    %19 = vector.broadcast %18 : vector<1x1xf32> to vector<2x1xf32>
    %20 = arith.addf %17, %19 : vector<2x1xf32>
    %c0_13 = arith.constant 0 : index
    %c0_14 = arith.constant 0 : index
    %21 = vector.load %arg6[%c0_13, %c0_14] : memref<2x1xf32, #tpu.memory_space<vmem>>, vector<2x1xf32>
    tpu.vector_store %arg6[%c0_13, %c0_14], %20 {strides = array<i32>} : memref<2x1xf32, #tpu.memory_space<vmem>>, vector<2x1xf32>,
    return
  }
  func.func @transform_0(%arg0: i32) -> (i32, i32) {
    %c0_i32 = arith.constant 0 : i32
    %c0_i32_0 = arith.constant 0 : i32
    %c0_i32_1 = arith.constant 0 : i32
    return %c0_i32, %c0_i32_0 : i32, i32
  }
  func.func @transform_1(%arg0: i32) -> (i32, i32) {
    %c0_i32 = arith.constant 0 : i32
    %c0_i32_0 = arith.constant 0 : i32
    %c0_i32_1 = arith.constant 0 : i32
    return %c0_i32, %c0_i32_0 : i32, i32
  }
  func.func @transform_2(%arg0: i32) -> (i32, i32) {
    %c0_i32 = arith.constant 0 : i32
    %c0_i32_0 = arith.constant 0 : i32
    %c0_i32_1 = arith.constant 0 : i32
    return %c0_i32, %c0_i32_0 : i32, i32
  }
  func.func @transform_3(%arg0: i32) -> (i32, i32) {
    %c0_i32 = arith.constant 0 : i32
    %c0_i32_0 = arith.constant 0 : i32
    %c0_i32_1 = arith.constant 0 : i32
    return %c0_i32, %c0_i32_0 : i32, i32
  }
  func.func @transform_4(%arg0: i32) -> (i32, i32) {
    %c0_i32 = arith.constant 0 : i32
    %c0_i32_0 = arith.constant 0 : i32
    %c0_i32_1 = arith.constant 0 : i32
    return %c0_i32, %c0_i32_0 : i32, i32
  }
  func.func @transform_5(%arg0: i32) -> (i32, i32) {
    %c0_i32 = arith.constant 0 : i32
    %c0_i32_0 = arith.constant 0 : i32
    %c0_i32_1 = arith.constant 0 : i32
    return %c0_i32, %c0_i32_0 : i32, i32
  }
}

</mosaic_0001>

<llo_original>
// kernel: net_forward.1
$region0: #{net_forward.1}
  #allocation0 [shape = 'u32[]', space=smem, size = 0x4, offset = 0x4, fixed_abs, tag = 'smem constant byte address 0x4 - core index']
  #allocation1 [shape = 'u32[144,128]{1,0:T(1,128)}', space=vmem, size = 0x12000, scoped, tag = 'internal scratch']
  #allocation2 [shape = 'f32[1,1]{1,0:T(1,128)S(1)}', space=vmem, size = 0x200, scoped, tag = 'scoped memory for net_forward.1']
  %s0 = inlined_call_operand.vmem [shape: f32[512,27], index: 0, kind: input, shape index: {}]
  %s1 = inlined_call_operand.vmem [shape: f32[27,64], index: 1, kind: input, shape index: {}]
  %s2 = inlined_call_operand.vmem [shape: f32[1,64], index: 2, kind: input, shape index: {}]
  %s3 = inlined_call_operand.vmem [shape: f32[64,64], index: 3, kind: input, shape index: {}]
  %s4 = inlined_call_operand.<no memory space> [shape: f32[1,1], index: 4, kind: input, shape index: {}]
  %s5 = inlined_call_operand.vmem [shape: f32[2,1], index: 5, kind: output, shape index: {}]
  %s6 = sld [smem:[#allocation0]]
  $region30: #{net_forward.1} parent=0
    _
  %s8 = ssub.s32 1, %s6
  %s9 = scalar_select 0, %s8, %s6
  %v10 = vstv %s4
  %11 = vst [vmem:[#allocation2] sm:$0x1] %v10
  // Predicated region
  $region2: #{net_forward.1} parent=0 // pred_check
    _
  $region3: #{net_forward.1} parent=0 // pred_check_branch
    %13 = sbr.rel (0) target = $region5
  $region4: #{net_forward.1} parent=0 // pred_region
    _
  $region5: #{net_forward.1} parent=0 // pred_fallthru
    _
  // Predicated region
  $region6: #{net_forward.1} parent=0 // pred_check
    _
  $region7: #{net_forward.1} parent=0 // pred_check_branch
    %15 = sbr.rel (0) target = $region9
  $region8: #{net_forward.1} parent=0 // pred_region
    _
  $region9: #{net_forward.1} parent=0 // pred_fallthru
    _
  // Predicated region
  $region10: #{net_forward.1} parent=0 // pred_check
    _
  $region11: #{net_forward.1} parent=0 // pred_check_branch
    %17 = sbr.rel (0) target = $region13
  $region12: #{net_forward.1} parent=0 // pred_region
    _
  $region13: #{net_forward.1} parent=0 // pred_fallthru
    _
  // Predicated region
  $region14: #{net_forward.1} parent=0 // pred_check
    _
  $region15: #{net_forward.1} parent=0 // pred_check_branch
    %19 = sbr.rel (0) target = $region17
  $region16: #{net_forward.1} parent=0 // pred_region
    _
  $region17: #{net_forward.1} parent=0 // pred_fallthru
    _
  // Predicated region
  $region18: #{net_forward.1} parent=0 // pred_check
    _
  $region19: #{net_forward.1} parent=0 // pred_check_branch
    %21 = sbr.rel (0) target = $region21
  $region20: #{net_forward.1} parent=0 // pred_region
    _
  $region21: #{net_forward.1} parent=0 // pred_fallthru
    _
  %v22 = vld [vmem:[%s0] sm:$0xff]
  %v23 = vld [vmem:[%s0 + $0x8] sm:$0xff]
  %v24 = vld [vmem:[%s0 + $0x10] sm:$0xff]
  %v25 = vld [vmem:[%s0 + $0x18] sm:$0xff]
  %v26 = vld [vmem:[%s0 + $0x20] sm:$0xff]
  %v27 = vld [vmem:[%s0 + $0x28] sm:$0xff]
  %v28 = vld [vmem:[%s0 + $0x30] sm:$0xff]
  %v29 = vld [vmem:[%s0 + $0x38] sm:$0xff]
  %v30 = vld [vmem:[%s0 + $0x40] sm:$0xff]
  %v31 = vld [vmem:[%s0 + $0x48] sm:$0xff]
  %v32 = vld [vmem:[%s0 + $0x50] sm:$0xff]
  %v33 = vld [vmem:[%s0 + $0x58] sm:$0xff]
  %v34 = vld [vmem:[%s0 + $0x60] sm:$0xff]
  %v35 = vld [vmem:[%s0 + $0x68] sm:$0xff]
  %v36 = vld [vmem:[%s0 + $0x70] sm:$0xff]
  %v37 = vld [vmem:[%s0 + $0x78] sm:$0xff]
  %v38 = vld [vmem:[%s0 + $0x80] sm:$0xff]
  %v39 = vld [vmem:[%s0 + $0x88] sm:$0xff]
  %v40 = vld [vmem:[%s0 + $0x90] sm:$0xff]
  %v41 = vld [vmem:[%s0 + $0x98] sm:$0xff]
  %v42 = vld [vmem:[%s0 + $0xa0] sm:$0xff]
  %v43 = vld [vmem:[%s0 + $0xa8] sm:$0xff]
  %v44 = vld [vmem:[%s0 + $0xb0] sm:$0xff]
  %v45 = vld [vmem:[%s0 + $0xb8] sm:$0xff]
  %v46 = vld [vmem:[%s0 + $0xc0] sm:$0xff]
  %v47 = vld [vmem:[%s0 + $0xc8] sm:$0xff]
  %v48 = vld [vmem:[%s0 + $0xd0] sm:$0xff]
  %v49 = vld [vmem:[%s0 + $0xd8] sm:$0xff]
  %v50 = vld [vmem:[%s0 + $0xe0] sm:$0xff]
  %v51 = vld [vmem:[%s0 + $0xe8] sm:$0xff]
  %v52 = vld [vmem:[%s0 + $0xf0] sm:$0xff]
  %v53 = vld [vmem:[%s0 + $0xf8] sm:$0xff]
  %v54 = vld [vmem:[%s0 + $0x100] sm:$0xff]
  %v55 = vld [vmem:[%s0 + $0x108] sm:$0xff]
  %v56 = vld [vmem:[%s0 + $0x110] sm:$0xff]
  %v57 = vld [vmem:[%s0 + $0x118] sm:$0xff]
  %v58 = vld [vmem:[%s0 + $0x120] sm:$0xff]
  %v59 = vld [vmem:[%s0 + $0x128] sm:$0xff]
  %v60 = vld [vmem:[%s0 + $0x130] sm:$0xff]
  %v61 = vld [vmem:[%s0 + $0x138] sm:$0xff]
  %v62 = vld [vmem:[%s0 + $0x140] sm:$0xff]
  %v63 = vld [vmem:[%s0 + $0x148] sm:$0xff]
  %v64 = vld [vmem:[%s0 + $0x150] sm:$0xff]
  %v65 = vld [vmem:[%s0 + $0x158] sm:$0xff]
  %v66 = vld [vmem:[%s0 + $0x160] sm:$0xff]
  %v67 = vld [vmem:[%s0 + $0x168] sm:$0xff]
  %v68 = vld [vmem:[%s0 + $0x170] sm:$0xff]
  %v69 = vld [vmem:[%s0 + $0x178] sm:$0xff]
  %v70 = vld [vmem:[%s0 + $0x180] sm:$0xff]
  %v71 = vld [vmem:[%s0 + $0x188] sm:$0xff]
  %v72 = vld [vmem:[%s0 + $0x190] sm:$0xff]
  %v73 = vld [vmem:[%s0 + $0x198] sm:$0xff]
  %v74 = vld [vmem:[%s0 + $0x1a0] sm:$0xff]
  %v75 = vld [vmem:[%s0 + $0x1a8] sm:$0xff]
  %v76 = vld [vmem:[%s0 + $0x1b0] sm:$0xff]
  %v77 = vld [vmem:[%s0 + $0x1b8] sm:$0xff]
  %v78 = vld [vmem:[%s0 + $0x1c0] sm:$0xff]
  %v79 = vld [vmem:[%s0 + $0x1c8] sm:$0xff]
  %v80 = vld [vmem:[%s0 + $0x1d0] sm:$0xff]
  %v81 = vld [vmem:[%s0 + $0x1d8] sm:$0xff]
  %v82 = vld [vmem:[%s0 + $0x1e0] sm:$0xff]
  %v83 = vld [vmem:[%s0 + $0x1e8] sm:$0xff]
  %v84 = vld [vmem:[%s0 + $0x1f0] sm:$0xff]
  %v85 = vld [vmem:[%s0 + $0x1f8] sm:$0xff]
  %v86 = vld [vmem:[%s1] sm:$0xff]
  %v87 = vld [vmem:[%s1 + $0x8] sm:$0xff]
  %v88 = vld [vmem:[%s1 + $0x10] sm:$0xff]
  %v89 = vld [vmem:[%s1 + $0x18] sm:$0x7]
  %vm90 = vcmask 220160
  %v92 = vsel %vm90, %v22, 0
  %v95 = vsel %vm90, %v23, 0
  %v98 = vsel %vm90, %v24, 0
  %v101 = vsel %vm90, %v25, 0
  %v104 = vsel %vm90, %v26, 0
  %v107 = vsel %vm90, %v27, 0
  %v110 = vsel %vm90, %v28, 0
  %v113 = vsel %vm90, %v29, 0
  %v116 = vsel %vm90, %v30, 0
  %v119 = vsel %vm90, %v31, 0
  %v122 = vsel %vm90, %v32, 0
  %v125 = vsel %vm90, %v33, 0
  %v128 = vsel %vm90, %v34, 0
  %v131 = vsel %vm90, %v35, 0
  %v134 = vsel %vm90, %v36, 0
  %v137 = vsel %vm90, %v37, 0
  %v140 = vsel %vm90, %v38, 0
  %v143 = vsel %vm90, %v39, 0
  %v146 = vsel %vm90, %v40, 0
  %v149 = vsel %vm90, %v41, 0
  %v152 = vsel %vm90, %v42, 0
  %v155 = vsel %vm90, %v43, 0
  %v158 = vsel %vm90, %v44, 0
  %v161 = vsel %vm90, %v45, 0
  %v164 = vsel %vm90, %v46, 0
  %v167 = vsel %vm90, %v47, 0
  %v170 = vsel %vm90, %v48, 0
  %v173 = vsel %vm90, %v49, 0
  %v176 = vsel %vm90, %v50, 0
  %v179 = vsel %vm90, %v51, 0
  %v182 = vsel %vm90, %v52, 0
  %v185 = vsel %vm90, %v53, 0
  %v188 = vsel %vm90, %v54, 0
  %v191 = vsel %vm90, %v55, 0
  %v194 = vsel %vm90, %v56, 0
  %v197 = vsel %vm90, %v57, 0
  %v200 = vsel %vm90, %v58, 0
  %v203 = vsel %vm90, %v59, 0
  %v206 = vsel %vm90, %v60, 0
  %v209 = vsel %vm90, %v61, 0
  %v212 = vsel %vm90, %v62, 0
  %v215 = vsel %vm90, %v63, 0
  %v218 = vsel %vm90, %v64, 0
  %v221 = vsel %vm90, %v65, 0
  %v224 = vsel %vm90, %v66, 0
  %v227 = vsel %vm90, %v67, 0
  %v230 = vsel %vm90, %v68, 0
  %v233 = vsel %vm90, %v69, 0
  %v236 = vsel %vm90, %v70, 0
  %v239 = vsel %vm90, %v71, 0
  %v242 = vsel %vm90, %v72, 0
  %v245 = vsel %vm90, %v73, 0
  %v248 = vsel %vm90, %v74, 0
  %v251 = vsel %vm90, %v75, 0
  %v254 = vsel %vm90, %v76, 0
  %v257 = vsel %vm90, %v77, 0
  %v260 = vsel %vm90, %v78, 0
  %v263 = vsel %vm90, %v79, 0
  %v266 = vsel %vm90, %v80, 0
  %v269 = vsel %vm90, %v81, 0
  %v272 = vsel %vm90, %v82, 0
  %v275 = vsel %vm90, %v83, 0
  %v278 = vsel %vm90, %v84, 0
  %v281 = vsel %vm90, %v85, 0
  %vm283 = vcmask 1042432
  %v285 = vsel %vm283, %v89, 0
  %287 = vmatprep.subr.mxu0 0.0
  %288 = vmatpush1.msra.mxu0 %v86
  %289 = vmatprep.subr.mxu0 0.0
  %290 = vmatpush1.msra.mxu0 %v87
  %291 = vmatprep.subr.mxu0 0.0
  %292 = vmatpush1.msra.mxu0 %v88
  %293 = vmatprep.subr.mxu0 0.0
  %294 = vmatpush1.msra.mxu0 %v285
  %295 = vmatprep.subr.mxu0 0.0
  %296 = vmatpush1.msra.mxu0 0.0
  %297 = vmatprep.subr.mxu0 0.0
  %298 = vmatpush1.msra.mxu0 0.0
  %299 = vmatprep.subr.mxu0 0.0
  %300 = vmatpush1.msra.mxu0 0.0
  %301 = vmatprep.subr.mxu0 0.0
  %302 = vmatpush1.msra.mxu0 0.0
  %303 = vmatprep.subr.mxu0 0.0
  %304 = vmatpush1.msra.mxu0 0.0
  %305 = vmatprep.subr.mxu0 0.0
  %306 = vmatpush1.msra.mxu0 0.0
  %307 = vmatprep.subr.mxu0 0.0
  %308 = vmatpush1.msra.mxu0 0.0
  %309 = vmatprep.subr.mxu0 0.0
  %310 = vmatpush1.msra.mxu0 0.0
  %311 = vmatprep.subr.mxu0 0.0
  %312 = vmatpush1.msra.mxu0 0.0
  %313 = vmatprep.subr.mxu0 0.0
  %314 = vmatpush1.msra.mxu0 0.0
  %315 = vmatprep.subr.mxu0 0.0
  %316 = vmatpush1.msra.mxu0 0.0
  %317 = vmatprep.subr.mxu0 0.0
  %318 = vmatpush1.msra.mxu0 0.0
  %319 = vmatprep.subr.mxu0 0.0
  %320 = vmatpush1.msra.mxu0 0.0
  %321 = vmatprep.subr.mxu0 0.0
  %322 = vmatpush1.msra.mxu0 0.0
  %323 = vmatprep.subr.mxu0 0.0
  %324 = vmatpush1.msra.mxu0 0.0
  %325 = vmatprep.subr.mxu0 0.0
  %326 = vmatpush1.msra.mxu0 0.0
  %327 = vmatprep.subr.mxu0 0.0
  %328 = vmatpush1.msra.mxu0 0.0
  %329 = vmatprep.subr.mxu0 0.0
  %330 = vmatpush1.msra.mxu0 0.0
  %331 = vmatprep.subr.mxu0 0.0
  %332 = vmatpush1.msra.mxu0 0.0
  %333 = vmatprep.subr.mxu0 0.0
  %334 = vmatpush1.msra.mxu0 0.0
  %335 = vmatprep.subr.mxu0 0.0
  %336 = vmatpush1.msra.mxu0 0.0
  %337 = vmatprep.subr.mxu0 0.0
  %338 = vmatpush1.msra.mxu0 0.0
  %339 = vmatprep.subr.mxu0 0.0
  %340 = vmatpush1.msra.mxu0 0.0
  %341 = vmatprep.subr.mxu0 0.0
  %342 = vmatpush1.msra.mxu0 0.0
  %343 = vmatprep.subr.mxu0 0.0
  %344 = vmatpush1.msra.mxu0 0.0
  %345 = vmatprep.subr.mxu0 0.0
  %346 = vmatpush1.msra.mxu0 0.0
  %347 = vmatprep.subr.mxu0 0.0
  %348 = vmatpush1.msra.mxu0 0.0
  %349 = vmatprep.subr.mxu0 0.0
  %350 = vmatpush1.msra.mxu0 0.0
  %351 = vmatprep.mubr.f32.mxu0 0.0
  %352 = vmatmul.mubr.f32.gmra.mrb[0].mxu0 %v92
  %v353 = vpop.f32.mrb[0].mxu0
  %v354 = vadd.f32 0.0, %v353
  %v355 = vpop.f32.mrb[0].mxu0
  %356 = vmatprep.mubr.f32.mxu0 0.0
  %357 = vmatmul.mubr.f32.gmra.mrb[0].mxu0 %v95
  %v358 = vpop.f32.mrb[0].mxu0
  %v359 = vadd.f32 0.0, %v358
  %v360 = vpop.f32.mrb[0].mxu0
  %361 = vmatprep.mubr.f32.mxu0 0.0
  %362 = vmatmul.mubr.f32.gmra.mrb[0].mxu0 %v98
  %v363 = vpop.f32.mrb[0].mxu0
  %v364 = vadd.f32 0.0, %v363
  %v365 = vpop.f32.mrb[0].mxu0
  %366 = vmatprep.mubr.f32.mxu0 0.0
  %367 = vmatmul.mubr.f32.gmra.mrb[0].mxu0 %v101
  %v368 = vpop.f32.mrb[0].mxu0
  %v369 = vadd.f32 0.0, %v368
  %v370 = vpop.f32.mrb[0].mxu0
  %371 = vmatprep.mubr.f32.mxu0 0.0
  %372 = vmatmul.mubr.f32.gmra.mrb[0].mxu0 %v104
  %v373 = vpop.f32.mrb[0].mxu0
  %v374 = vadd.f32 0.0, %v373
  %v375 = vpop.f32.mrb[0].mxu0
  %376 = vmatprep.mubr.f32.mxu0 0.0
  %377 = vmatmul.mubr.f32.gmra.mrb[0].mxu0 %v107
  %v378 = vpop.f32.mrb[0].mxu0
  %v379 = vadd.f32 0.0, %v378
  %v380 = vpop.f32.mrb[0].mxu0
  %381 = vmatprep.mubr.f32.mxu0 0.0
  %382 = vmatmul.mubr.f32.gmra.mrb[0].mxu0 %v110
  %v383 = vpop.f32.mrb[0].mxu0
  %v384 = vadd.f32 0.0, %v383
  %v385 = vpop.f32.mrb[0].mxu0
  %386 = vmatprep.mubr.f32.mxu0 0.0
  %387 = vmatmul.mubr.f32.gmra.mrb[0].mxu0 %v113
  %v388 = vpop.f32.mrb[0].mxu0
  %v389 = vadd.f32 0.0, %v388
  %v390 = vpop.f32.mrb[0].mxu0
  %391 = vmatprep.mubr.f32.mxu0 0.0
  %392 = vmatmul.mubr.f32.gmra.mrb[0].mxu0 %v116
  %v393 = vpop.f32.mrb[0].mxu0
  %v394 = vadd.f32 0.0, %v393
  %v395 = vpop.f32.mrb[0].mxu0
  %396 = vmatprep.mubr.f32.mxu0 0.0
  %397 = vmatmul.mubr.f32.gmra.mrb[0].mxu0 %v119
  %v398 = vpop.f32.mrb[0].mxu0
  %v399 = vadd.f32 0.0, %v398
  %v400 = vpop.f32.mrb[0].mxu0
  %401 = vmatprep.mubr.f32.mxu0 0.0
  %402 = vmatmul.mubr.f32.gmra.mrb[0].mxu0 %v122
  %v403 = vpop.f32.mrb[0].mxu0
  %v404 = vadd.f32 0.0, %v403
  %v405 = vpop.f32.mrb[0].mxu0
  %406 = vmatprep.mubr.f32.mxu0 0.0
  %407 = vmatmul.mubr.f32.gmra.mrb[0].mxu0 %v125
  %v408 = vpop.f32.mrb[0].mxu0
  %v409 = vadd.f32 0.0, %v408
  %v410 = vpop.f32.mrb[0].mxu0
  %411 = vmatprep.mubr.f32.mxu0 0.0
  %412 = vmatmul.mubr.f32.gmra.mrb[0].mxu0 %v128
  %v413 = vpop.f32.mrb[0].mxu0
  %v414 = vadd.f32 0.0, %v413
  %v415 = vpop.f32.mrb[0].mxu0
  %416 = vmatprep.mubr.f32.mxu0 0.0
  %417 = vmatmul.mubr.f32.gmra.mrb[0].mxu0 %v131
  %v418 = vpop.f32.mrb[0].mxu0
  %v419 = vadd.f32 0.0, %v418
  %v420 = vpop.f32.mrb[0].mxu0
  %421 = vmatprep.mubr.f32.mxu0 0.0
  %422 = vmatmul.mubr.f32.gmra.mrb[0].mxu0 %v134
  %v423 = vpop.f32.mrb[0].mxu0
  %v424 = vadd.f32 0.0, %v423
  %v425 = vpop.f32.mrb[0].mxu0
  %426 = vmatprep.mubr.f32.mxu0 0.0
  %427 = vmatmul.mubr.f32.gmra.mrb[0].mxu0 %v137
  %v428 = vpop.f32.mrb[0].mxu0
  %v429 = vadd.f32 0.0, %v428
  %v430 = vpop.f32.mrb[0].mxu0
  %431 = vmatprep.mubr.f32.mxu0 0.0
  %432 = vmatmul.mubr.f32.gmra.mrb[0].mxu0 %v140
  %v433 = vpop.f32.mrb[0].mxu0
  %v434 = vadd.f32 0.0, %v433
  %v435 = vpop.f32.mrb[0].mxu0
  %436 = vmatprep.mubr.f32.mxu0 0.0
  %437 = vmatmul.mubr.f32.gmra.mrb[0].mxu0 %v143
  %v438 = vpop.f32.mrb[0].mxu0
  %v439 = vadd.f32 0.0, %v438
  %v440 = vpop.f32.mrb[0].mxu0
  %441 = vmatprep.mubr.f32.mxu0 0.0
  %442 = vmatmul.mubr.f32.gmra.mrb[0].mxu0 %v146
  %v443 = vpop.f32.mrb[0].mxu0
  %v444 = vadd.f32 0.0, %v443
  %v445 = vpop.f32.mrb[0].mxu0
  %446 = vmatprep.mubr.f32.mxu0 0.0
  %447 = vmatmul.mubr.f32.gmra.mrb[0].mxu0 %v149
  %v448 = vpop.f32.mrb[0].mxu0
  %v449 = vadd.f32 0.0, %v448
  %v450 = vpop.f32.mrb[0].mxu0
  %451 = vmatprep.mubr.f32.mxu0 0.0
  %452 = vmatmul.mubr.f32.gmra.mrb[0].mxu0 %v152
  %v453 = vpop.f32.mrb[0].mxu0
  %v454 = vadd.f32 0.0, %v453
  %v455 = vpop.f32.mrb[0].mxu0
  %456 = vmatprep.mubr.f32.mxu0 0.0
  %457 = vmatmul.mubr.f32.gmra.mrb[0].mxu0 %v155
  %v458 = vpop.f32.mrb[0].mxu0
  %v459 = vadd.f32 0.0, %v458
  %v460 = vpop.f32.mrb[0].mxu0
  %461 = vmatprep.mubr.f32.mxu0 0.0
  %462 = vmatmul.mubr.f32.gmra.mrb[0].mxu0 %v158
  %v463 = vpop.f32.mrb[0].mxu0
  %v464 = vadd.f32 0.0, %v463
  %v465 = vpop.f32.mrb[0].mxu0
  %466 = vmatprep.mubr.f32.mxu0 0.0
  %467 = vmatmul.mubr.f32.gmra.mrb[0].mxu0 %v161
  %v468 = vpop.f32.mrb[0].mxu0
  %v469 = vadd.f32 0.0, %v468
  %v470 = vpop.f32.mrb[0].mxu0
  %471 = vmatprep.mubr.f32.mxu0 0.0
  %472 = vmatmul.mubr.f32.gmra.mrb[0].mxu0 %v164
  %v473 = vpop.f32.mrb[0].mxu0
  %v474 = vadd.f32 0.0, %v473
  %v475 = vpop.f32.mrb[0].mxu0
  %476 = vmatprep.mubr.f32.mxu0 0.0
  %477 = vmatmul.mubr.f32.gmra.mrb[0].mxu0 %v167
  %v478 = vpop.f32.mrb[0].mxu0
  %v479 = vadd.f32 0.0, %v478
  %v480 = vpop.f32.mrb[0].mxu0
  %481 = vmatprep.mubr.f32.mxu0 0.0
  %482 = vmatmul.mubr.f32.gmra.mrb[0].mxu0 %v170
  %v483 = vpop.f32.mrb[0].mxu0
  %v484 = vadd.f32 0.0, %v483
  %v485 = vpop.f32.mrb[0].mxu0
  %486 = vmatprep.mubr.f32.mxu0 0.0
  %487 = vmatmul.mubr.f32.gmra.mrb[0].mxu0 %v173
  %v488 = vpop.f32.mrb[0].mxu0
  %v489 = vadd.f32 0.0, %v488
  %v490 = vpop.f32.mrb[0].mxu0
  %491 = vmatprep.mubr.f32.mxu0 0.0
  %492 = vmatmul.mubr.f32.gmra.mrb[0].mxu0 %v176
  %v493 = vpop.f32.mrb[0].mxu0
  %v494 = vadd.f32 0.0, %v493
  %v495 = vpop.f32.mrb[0].mxu0
  %496 = vmatprep.mubr.f32.mxu0 0.0
  %497 = vmatmul.mubr.f32.gmra.mrb[0].mxu0 %v179
  %v498 = vpop.f32.mrb[0].mxu0
  %v499 = vadd.f32 0.0, %v498
  %v500 = vpop.f32.mrb[0].mxu0
  %501 = vmatprep.mubr.f32.mxu0 0.0
  %502 = vmatmul.mubr.f32.gmra.mrb[0].mxu0 %v182
  %v503 = vpop.f32.mrb[0].mxu0
  %v504 = vadd.f32 0.0, %v503
  %v505 = vpop.f32.mrb[0].mxu0
  %506 = vmatprep.mubr.f32.mxu0 0.0
  %507 = vmatmul.mubr.f32.gmra.mrb[0].mxu0 %v185
  %v508 = vpop.f32.mrb[0].mxu0
  %v509 = vadd.f32 0.0, %v508
  %v510 = vpop.f32.mrb[0].mxu0
  %511 = vmatprep.mubr.f32.mxu0 0.0
  %512 = vmatmul.mubr.f32.gmra.mrb[0].mxu0 %v188
  %v513 = vpop.f32.mrb[0].mxu0
  %v514 = vadd.f32 0.0, %v513
  %v515 = vpop.f32.mrb[0].mxu0
  %516 = vmatprep.mubr.f32.mxu0 0.0
  %517 = vmatmul.mubr.f32.gmra.mrb[0].mxu0 %v191
  %v518 = vpop.f32.mrb[0].mxu0
  %v519 = vadd.f32 0.0, %v518
  %v520 = vpop.f32.mrb[0].mxu0
  %521 = vmatprep.mubr.f32.mxu0 0.0
  %522 = vmatmul.mubr.f32.gmra.mrb[0].mxu0 %v194
  %v523 = vpop.f32.mrb[0].mxu0
  %v524 = vadd.f32 0.0, %v523
  %v525 = vpop.f32.mrb[0].mxu0
  %526 = vmatprep.mubr.f32.mxu0 0.0
  %527 = vmatmul.mubr.f32.gmra.mrb[0].mxu0 %v197
  %v528 = vpop.f32.mrb[0].mxu0
  %v529 = vadd.f32 0.0, %v528
  %v530 = vpop.f32.mrb[0].mxu0
  %531 = vmatprep.mubr.f32.mxu0 0.0
  %532 = vmatmul.mubr.f32.gmra.mrb[0].mxu0 %v200
  %v533 = vpop.f32.mrb[0].mxu0
  %v534 = vadd.f32 0.0, %v533
  %v535 = vpop.f32.mrb[0].mxu0
  %536 = vmatprep.mubr.f32.mxu0 0.0
  %537 = vmatmul.mubr.f32.gmra.mrb[0].mxu0 %v203
  %v538 = vpop.f32.mrb[0].mxu0
  %v539 = vadd.f32 0.0, %v538
  %v540 = vpop.f32.mrb[0].mxu0
  %541 = vmatprep.mubr.f32.mxu0 0.0
  %542 = vmatmul.mubr.f32.gmra.mrb[0].mxu0 %v206
  %v543 = vpop.f32.mrb[0].mxu0
  %v544 = vadd.f32 0.0, %v543
  %v545 = vpop.f32.mrb[0].mxu0
  %546 = vmatprep.mubr.f32.mxu0 0.0
  %547 = vmatmul.mubr.f32.gmra.mrb[0].mxu0 %v209
  %v548 = vpop.f32.mrb[0].mxu0
  %v549 = vadd.f32 0.0, %v548
  %v550 = vpop.f32.mrb[0].mxu0
  %551 = vmatprep.mubr.f32.mxu0 0.0
  %552 = vmatmul.mubr.f32.gmra.mrb[0].mxu0 %v212
  %v553 = vpop.f32.mrb[0].mxu0
  %v554 = vadd.f32 0.0, %v553
  %v555 = vpop.f32.mrb[0].mxu0
  %556 = vmatprep.mubr.f32.mxu0 0.0
  %557 = vmatmul.mubr.f32.gmra.mrb[0].mxu0 %v215
  %v558 = vpop.f32.mrb[0].mxu0
  %v559 = vadd.f32 0.0, %v558
  %v560 = vpop.f32.mrb[0].mxu0
  %561 = vmatprep.mubr.f32.mxu0 0.0
  %562 = vmatmul.mubr.f32.gmra.mrb[0].mxu0 %v218
  %v563 = vpop.f32.mrb[0].mxu0
  %v564 = vadd.f32 0.0, %v563
  %v565 = vpop.f32.mrb[0].mxu0
  %566 = vmatprep.mubr.f32.mxu0 0.0
  %567 = vmatmul.mubr.f32.gmra.mrb[0].mxu0 %v221
  %v568 = vpop.f32.mrb[0].mxu0
  %v569 = vadd.f32 0.0, %v568
  %v570 = vpop.f32.mrb[0].mxu0
  %571 = vmatprep.mubr.f32.mxu0 0.0
  %572 = vmatmul.mubr.f32.gmra.mrb[0].mxu0 %v224
  %v573 = vpop.f32.mrb[0].mxu0
  %v574 = vadd.f32 0.0, %v573
  %v575 = vpop.f32.mrb[0].mxu0
  %576 = vmatprep.mubr.f32.mxu0 0.0
  %577 = vmatmul.mubr.f32.gmra.mrb[0].mxu0 %v227
  %v578 = vpop.f32.mrb[0].mxu0
  %v579 = vadd.f32 0.0, %v578
  %v580 = vpop.f32.mrb[0].mxu0
  %581 = vmatprep.mubr.f32.mxu0 0.0
  %582 = vmatmul.mubr.f32.gmra.mrb[0].mxu0 %v230
  %v583 = vpop.f32.mrb[0].mxu0
  %v584 = vadd.f32 0.0, %v583
  %v585 = vpop.f32.mrb[0].mxu0
  %586 = vmatprep.mubr.f32.mxu0 0.0
  %587 = vmatmul.mubr.f32.gmra.mrb[0].mxu0 %v233
  %v588 = vpop.f32.mrb[0].mxu0
  %v589 = vadd.f32 0.0, %v588
  %v590 = vpop.f32.mrb[0].mxu0
  %591 = vmatprep.mubr.f32.mxu0 0.0
  %592 = vmatmul.mubr.f32.gmra.mrb[0].mxu0 %v236
  %v593 = vpop.f32.mrb[0].mxu0
  %v594 = vadd.f32 0.0, %v593
  %v595 = vpop.f32.mrb[0].mxu0
  %596 = vmatprep.mubr.f32.mxu0 0.0
  %597 = vmatmul.mubr.f32.gmra.mrb[0].mxu0 %v239
  %v598 = vpop.f32.mrb[0].mxu0
  %v599 = vadd.f32 0.0, %v598
  %v600 = vpop.f32.mrb[0].mxu0
  %601 = vmatprep.mubr.f32.mxu0 0.0
  %602 = vmatmul.mubr.f32.gmra.mrb[0].mxu0 %v242
  %v603 = vpop.f32.mrb[0].mxu0
  %v604 = vadd.f32 0.0, %v603
  %v605 = vpop.f32.mrb[0].mxu0
  %606 = vmatprep.mubr.f32.mxu0 0.0
  %607 = vmatmul.mubr.f32.gmra.mrb[0].mxu0 %v245
  %v608 = vpop.f32.mrb[0].mxu0
  %v609 = vadd.f32 0.0, %v608
  %v610 = vpop.f32.mrb[0].mxu0
  %611 = vmatprep.mubr.f32.mxu0 0.0
  %612 = vmatmul.mubr.f32.gmra.mrb[0].mxu0 %v248
  %v613 = vpop.f32.mrb[0].mxu0
  %v614 = vadd.f32 0.0, %v613
  %v615 = vpop.f32.mrb[0].mxu0
  %616 = vmatprep.mubr.f32.mxu0 0.0
  %617 = vmatmul.mubr.f32.gmra.mrb[0].mxu0 %v251
  %v618 = vpop.f32.mrb[0].mxu0
  %v619 = vadd.f32 0.0, %v618
  %v620 = vpop.f32.mrb[0].mxu0
  %621 = vmatprep.mubr.f32.mxu0 0.0
  %622 = vmatmul.mubr.f32.gmra.mrb[0].mxu0 %v254
  %v623 = vpop.f32.mrb[0].mxu0
  %v624 = vadd.f32 0.0, %v623
  %v625 = vpop.f32.mrb[0].mxu0
  %626 = vmatprep.mubr.f32.mxu0 0.0
  %627 = vmatmul.mubr.f32.gmra.mrb[0].mxu0 %v257
  %v628 = vpop.f32.mrb[0].mxu0
  %v629 = vadd.f32 0.0, %v628
  %v630 = vpop.f32.mrb[0].mxu0
  %631 = vmatprep.mubr.f32.mxu0 0.0
  %632 = vmatmul.mubr.f32.gmra.mrb[0].mxu0 %v260
  %v633 = vpop.f32.mrb[0].mxu0
  %v634 = vadd.f32 0.0, %v633
  %v635 = vpop.f32.mrb[0].mxu0
  %636 = vmatprep.mubr.f32.mxu0 0.0
  %637 = vmatmul.mubr.f32.gmra.mrb[0].mxu0 %v263
  %v638 = vpop.f32.mrb[0].mxu0
  %v639 = vadd.f32 0.0, %v638
  %v640 = vpop.f32.mrb[0].mxu0
  %641 = vmatprep.mubr.f32.mxu0 0.0
  %642 = vmatmul.mubr.f32.gmra.mrb[0].mxu0 %v266
  %v643 = vpop.f32.mrb[0].mxu0
  %v644 = vadd.f32 0.0, %v643
  %v645 = vpop.f32.mrb[0].mxu0
  %646 = vmatprep.mubr.f32.mxu0 0.0
  %647 = vmatmul.mubr.f32.gmra.mrb[0].mxu0 %v269
  %v648 = vpop.f32.mrb[0].mxu0
  %v649 = vadd.f32 0.0, %v648
  %v650 = vpop.f32.mrb[0].mxu0
  %651 = vmatprep.mubr.f32.mxu0 0.0
  %652 = vmatmul.mubr.f32.gmra.mrb[0].mxu0 %v272
  %v653 = vpop.f32.mrb[0].mxu0
  %v654 = vadd.f32 0.0, %v653
  %v655 = vpop.f32.mrb[0].mxu0
  %656 = vmatprep.mubr.f32.mxu0 0.0
  %657 = vmatmul.mubr.f32.gmra.mrb[0].mxu0 %v275
  %v658 = vpop.f32.mrb[0].mxu0
  %v659 = vadd.f32 0.0, %v658
  %v660 = vpop.f32.mrb[0].mxu0
  %661 = vmatprep.mubr.f32.mxu0 0.0
  %662 = vmatmul.mubr.f32.gmra.mrb[0].mxu0 %v278
  %v663 = vpop.f32.mrb[0].mxu0
  %v664 = vadd.f32 0.0, %v663
  %v665 = vpop.f32.mrb[0].mxu0
  %666 = vmatprep.mubr.f32.mxu0 0.0
  %667 = vmatmul.mubr.f32.gmra.mrb[0].mxu0 %v281
  %v668 = vpop.f32.mrb[0].mxu0
  %v669 = vadd.f32 0.0, %v668
  %v670 = vpop.f32.mrb[0].mxu0
  %671 = vdwg.mxu0
  %vm672 = vcmask 523264
  %v673 = vsel %vm672, %v354, -inf
  %v674 = vsel %vm672, %v394, -inf
  %v675 = vmax.f32 %v673, %v674
  %v676 = vsel %vm672, %v434, -inf
  %v677 = vmax.f32 %v675, %v676
  %v678 = vsel %vm672, %v474, -inf
  %v679 = vmax.f32 %v677, %v678
  %v680 = vsel %vm672, %v359, -inf
  %v681 = vsel %vm672, %v399, -inf
  %v682 = vmax.f32 %v680, %v681
  %v683 = vsel %vm672, %v439, -inf
  %v684 = vmax.f32 %v682, %v683
  %v685 = vsel %vm672, %v479, -inf
  %v686 = vmax.f32 %v684, %v685
  %v687 = vsel %vm672, %v364, -inf
  %v688 = vsel %vm672, %v404, -inf
  %v689 = vmax.f32 %v687, %v688
  %v690 = vsel %vm672, %v444, -inf
  %v691 = vmax.f32 %v689, %v690
  %v692 = vsel %vm672, %v484, -inf
  %v693 = vmax.f32 %v691, %v692
  %v694 = vsel %vm672, %v369, -inf
  %v695 = vsel %vm672, %v409, -inf
  %v696 = vmax.f32 %v694, %v695
  %v697 = vsel %vm672, %v449, -inf
  %v698 = vmax.f32 %v696, %v697
  %v699 = vsel %vm672, %v489, -inf
  %v700 = vmax.f32 %v698, %v699
  %v701 = vsel %vm672, %v374, -inf
  %v702 = vsel %vm672, %v414, -inf
  %v703 = vmax.f32 %v701, %v702
  %v704 = vsel %vm672, %v454, -inf
  %v705 = vmax.f32 %v703, %v704
  %v706 = vsel %vm672, %v494, -inf
  %v707 = vmax.f32 %v705, %v706
  %v708 = vsel %vm672, %v379, -inf
  %v709 = vsel %vm672, %v419, -inf
  %v710 = vmax.f32 %v708, %v709
  %v711 = vsel %vm672, %v459, -inf
  %v712 = vmax.f32 %v710, %v711
  %v713 = vsel %vm672, %v499, -inf
  %v714 = vmax.f32 %v712, %v713
  %v715 = vsel %vm672, %v384, -inf
  %v716 = vsel %vm672, %v424, -inf
  %v717 = vmax.f32 %v715, %v716
  %v718 = vsel %vm672, %v464, -inf
  %v719 = vmax.f32 %v717, %v718
  %v720 = vsel %vm672, %v504, -inf
  %v721 = vmax.f32 %v719, %v720
  %v722 = vsel %vm672, %v389, -inf
  %v723 = vsel %vm672, %v429, -inf
  %v724 = vmax.f32 %v722, %v723
  %v725 = vsel %vm672, %v469, -inf
  %v726 = vmax.f32 %v724, %v725
  %v727 = vsel %vm672, %v509, -inf
  %v728 = vmax.f32 %v726, %v727
  %v729 = vsel %vm672, %v514, -inf
  %v730 = vsel %vm672, %v554, -inf
  %v731 = vmax.f32 %v729, %v730
  %v732 = vsel %vm672, %v594, -inf
  %v733 = vmax.f32 %v731, %v732
  %v734 = vsel %vm672, %v634, -inf
  %v735 = vmax.f32 %v733, %v734
  %v736 = vsel %vm672, %v519, -inf
  %v737 = vsel %vm672, %v559, -inf
  %v738 = vmax.f32 %v736, %v737
  %v739 = vsel %vm672, %v599, -inf
  %v740 = vmax.f32 %v738, %v739
  %v741 = vsel %vm672, %v639, -inf
  %v742 = vmax.f32 %v740, %v741
  %v743 = vsel %vm672, %v524, -inf
  %v744 = vsel %vm672, %v564, -inf
  %v745 = vmax.f32 %v743, %v744
  %v746 = vsel %vm672, %v604, -inf
  %v747 = vmax.f32 %v745, %v746
  %v748 = vsel %vm672, %v644, -inf
  %v749 = vmax.f32 %v747, %v748
  %v750 = vsel %vm672, %v529, -inf
  %v751 = vsel %vm672, %v569, -inf
  %v752 = vmax.f32 %v750, %v751
  %v753 = vsel %vm672, %v609, -inf
  %v754 = vmax.f32 %v752, %v753
  %v755 = vsel %vm672, %v649, -inf
  %v756 = vmax.f32 %v754, %v755
  %v757 = vsel %vm672, %v534, -inf
  %v758 = vsel %vm672, %v574, -inf
  %v759 = vmax.f32 %v757, %v758
  %v760 = vsel %vm672, %v614, -inf
  %v761 = vmax.f32 %v759, %v760
  %v762 = vsel %vm672, %v654, -inf
  %v763 = vmax.f32 %v761, %v762
  %v764 = vsel %vm672, %v539, -inf
  %v765 = vsel %vm672, %v579, -inf
  %v766 = vmax.f32 %v764, %v765
  %v767 = vsel %vm672, %v619, -inf
  %v768 = vmax.f32 %v766, %v767
  %v769 = vsel %vm672, %v659, -inf
  %v770 = vmax.f32 %v768, %v769
  %v771 = vsel %vm672, %v544, -inf
  %v772 = vsel %vm672, %v584, -inf
  %v773 = vmax.f32 %v771, %v772
  %v774 = vsel %vm672, %v624, -inf
  %v775 = vmax.f32 %v773, %v774
  %v776 = vsel %vm672, %v664, -inf
  %v777 = vmax.f32 %v775, %v776
  %v778 = vsel %vm672, %v549, -inf
  %v779 = vsel %vm672, %v589, -inf
  %v780 = vmax.f32 %v778, %v779
  %v781 = vsel %vm672, %v629, -inf
  %v782 = vmax.f32 %v780, %v781
  %v783 = vsel %vm672, %v669, -inf
  %v784 = vmax.f32 %v782, %v783
  %v785 = vld [vmem:[%s2] sm:$0x1]
  %v787 = vlaneseq
  %v788 = vshrl.u32 %v787, 7
  %v789 = vsub.s32 0, %v788
  %v790 = vrot.slane %v785, %v789
  %v792 = vadd.f32 %v679, %v790
  %v793 = vadd.f32 %v686, %v790
  %v794 = vadd.f32 %v693, %v790
  %v795 = vadd.f32 %v700, %v790
  %v796 = vadd.f32 %v707, %v790
  %v797 = vadd.f32 %v714, %v790
  %v798 = vadd.f32 %v721, %v790
  %v799 = vadd.f32 %v728, %v790
  %v800 = vadd.f32 %v735, %v790
  %v801 = vadd.f32 %v742, %v790
  %v802 = vadd.f32 %v749, %v790
  %v803 = vadd.f32 %v756, %v790
  %v804 = vadd.f32 %v763, %v790
  %v805 = vadd.f32 %v770, %v790
  %v806 = vadd.f32 %v777, %v790
  %v807 = vadd.f32 %v784, %v790
  %v808 = vmax.f32 %v792, 0.0
  %v809 = vmax.f32 %v793, 0.0
  %v810 = vmax.f32 %v794, 0.0
  %v811 = vmax.f32 %v795, 0.0
  %v812 = vmax.f32 %v796, 0.0
  %v813 = vmax.f32 %v797, 0.0
  %v814 = vmax.f32 %v798, 0.0
  %v815 = vmax.f32 %v799, 0.0
  %v816 = vmax.f32 %v800, 0.0
  %v817 = vmax.f32 %v801, 0.0
  %v818 = vmax.f32 %v802, 0.0
  %v819 = vmax.f32 %v803, 0.0
  %v820 = vmax.f32 %v804, 0.0
  %v821 = vmax.f32 %v805, 0.0
  %v822 = vmax.f32 %v806, 0.0
  %v823 = vmax.f32 %v807, 0.0
  %v824 = vld [vmem:[%s3] sm:$0xff]
  %v825 = vld [vmem:[%s3 + $0x8] sm:$0xff]
  %v826 = vld [vmem:[%s3 + $0x10] sm:$0xff]
  %v827 = vld [vmem:[%s3 + $0x18] sm:$0xff]
  %v828 = vld [vmem:[%s3 + $0x20] sm:$0xff]
  %v829 = vld [vmem:[%s3 + $0x28] sm:$0xff]
  %v830 = vld [vmem:[%s3 + $0x30] sm:$0xff]
  %v831 = vld [vmem:[%s3 + $0x38] sm:$0xff]
  %v832 = vmul.f32 %v808, %v824
  %v833 = vmul.f32 %v809, %v825
  %v834 = vmul.f32 %v810, %v826
  %v835 = vmul.f32 %v811, %v827
  %v836 = vmul.f32 %v812, %v828
  %v837 = vmul.f32 %v813, %v829
  %v838 = vmul.f32 %v814, %v830
  %v839 = vmul.f32 %v815, %v831
  %v840 = vmul.f32 %v816, %v824
  %v841 = vmul.f32 %v817, %v825
  %v842 = vmul.f32 %v818, %v826
  %v843 = vmul.f32 %v819, %v827
  %v844 = vmul.f32 %v820, %v828
  %v845 = vmul.f32 %v821, %v829
  %v846 = vmul.f32 %v822, %v830
  %v847 = vmul.f32 %v823, %v831
  %v848 = vsel %vm672, %v832, 0.0
  %v849 = vsel %vm672, %v833, 0.0
  %v850 = vadd.f32 %v848, %v849
  %v851 = vsel %vm672, %v834, 0.0
  %v852 = vadd.f32 %v850, %v851
  %v853 = vsel %vm672, %v835, 0.0
  %v854 = vadd.f32 %v852, %v853
  %v855 = vsel %vm672, %v836, 0.0
  %v856 = vadd.f32 %v854, %v855
  %v857 = vsel %vm672, %v837, 0.0
  %v858 = vadd.f32 %v856, %v857
  %v859 = vsel %vm672, %v838, 0.0
  %v860 = vadd.f32 %v858, %v859
  %v861 = vsel %vm672, %v839, 0.0
  %v862 = vadd.f32 %v860, %v861
  %v863 = vrot.slane %v862, 4
  %v864 = vadd.f32 %v862, %v863
  %v865 = vrot.slane %v864, 2
  %v866 = vadd.f32 %v864, %v865
  %v867 = vrot.slane %v866, 1
  %v868 = vadd.f32 %v866, %v867
  %v869 = vsel %vm672, %v840, 0.0
  %v870 = vsel %vm672, %v841, 0.0
  %v871 = vadd.f32 %v869, %v870
  %v872 = vsel %vm672, %v842, 0.0
  %v873 = vadd.f32 %v871, %v872
  %v874 = vsel %vm672, %v843, 0.0
  %v875 = vadd.f32 %v873, %v874
  %v876 = vsel %vm672, %v844, 0.0
  %v877 = vadd.f32 %v875, %v876
  %v878 = vsel %vm672, %v845, 0.0
  %v879 = vadd.f32 %v877, %v878
  %v880 = vsel %vm672, %v846, 0.0
  %v881 = vadd.f32 %v879, %v880
  %v882 = vsel %vm672, %v847, 0.0
  %v883 = vadd.f32 %v881, %v882
  %v884 = vrot.slane %v883, 4
  %v885 = vadd.f32 %v883, %v884
  %v886 = vrot.slane %v885, 2
  %v887 = vadd.f32 %v885, %v886
  %v888 = vrot.slane %v887, 1
  %v889 = vadd.f32 %v887, %v888
  %vm892 = vcmask 1041409
  %v893 = vsel %vm892, %v889, %v868
  %vm895 = vcmask 517120
  %v896 = vsel %vm895, %v893, 0.0
  %897 = vadd.xlane.f32.xlu0 %v896
  %v898 = vpop.xlane.xlu0 %897
  %v899 = vld [vmem:[#allocation2] sm:$0x1]
  %v901 = vlaneseq
  %v902 = vshrl.u32 %v901, 7
  %v903 = vsub.s32 0, %v902
  %v904 = vrot.slane %v899, %v903
  %v906 = vadd.f32 %v898, %v904
  %vm907 = vcmask 1024
  %908 = vst.msk [vmem:[%s5] sm:$0x3] %vm907, %v906
  // Predicated region
  $region22: #{net_forward.1} parent=0 // pred_check
    _
  $region23: #{net_forward.1} parent=0 // pred_check_branch
    %910 = sbr.rel (0) target = $region25
  $region24: #{net_forward.1} parent=0 // pred_region
    _
  $region25: #{net_forward.1} parent=0 // pred_fallthru
    _
  // Predicated region
  $region26: #{net_forward.1} parent=0 // pred_check
    _
  $region27: #{net_forward.1} parent=0 // pred_check_branch
    %912 = sbr.rel (0) target = $region29
  $region28: #{net_forward.1} parent=0 // pred_region
    _
  $region29: #{net_forward.1} parent=0 // pred_fallthru
    _

</llo_original>
